<compile_context>
chip_gen: v7x
topology: tpu7x:2x2x1
jax: 0.10.0
libtpu: 0.0.40
codegen_flags: <defaults>
</compile_context>

<pallas_src>
import functools

import jax
import jax.numpy as jnp
from jax.experimental import pallas as pl
from jax.experimental.pallas import tpu as pltpu

IN_DIM = 2
HIDDEN = 64
OUT_DIM = 1
LANE = 128


def _round_up(n, m):
    return ((n + m - 1) // m) * m


def simple_nn_kernel(xT_ref, w1_ref, b1_ref, w2T_ref, b2_ref, oT_ref):
    # xT_ref : [IN_DIM, TB]        (batch on the lane axis)
    # w1_ref : [HIDDEN, IN_DIM]    (PyTorch fc1.weight layout)
    # b1_ref : [HIDDEN, 1]
    # w2T_ref: [HIDDEN, OUT_DIM]   (fc2.weight transposed)
    # b2_ref : [OUT_DIM]  in SMEM
    # oT_ref : [OUT_DIM, TB]
    x = xT_ref[...]
    w1 = w1_ref[...]

    # fc1 + ReLU as a VPU broadcast FMA: a K=2 MXU matmul would waste >98% of
    # the systolic array, so keep it on the vector unit.
    h = b1_ref[...]                                  # [HIDDEN, 1] broadcasts over lanes
    for k in range(IN_DIM):                          # static, 2 iterations
        h = h + w1[:, k:k + 1] * x[k:k + 1, :]       # [HIDDEN,1]*[1,TB] -> [HIDDEN,TB]
    h = jnp.maximum(h, 0.0)

    # fc2: VPU multiply + sublane (XLU) reduction over HIDDEN, lane-dense result.
    out = jnp.sum(w2T_ref[...] * h, axis=0, keepdims=True)   # [OUT_DIM, TB]
    oT_ref[...] = (out + b2_ref[0]).astype(oT_ref.dtype)


@functools.partial(jax.jit, static_argnames=("tb",))
def simple_nn_forward(x, w1, b1, w2, b2, *, tb=4096):
    """x: [B, IN_DIM] f32.  Params in PyTorch layout:
    w1 [HIDDEN, IN_DIM], b1 [HIDDEN], w2 [OUT_DIM, HIDDEN], b2 [OUT_DIM]."""
    B = x.shape[0]

    # Lane-dense batch tile: multiple of 128, capped so tiny batches use one step.
    tb = max(LANE, (tb // LANE) * LANE)
    tb = min(tb, _round_up(B, LANE))
    b_pad = _round_up(B, tb)
    grid = (b_pad // tb,)

    # Wrapper-side layout plumbing (pad + transpose so batch sits on lanes).
    xT = jnp.pad(x.astype(jnp.float32), ((0, b_pad - B), (0, 0))).T   # [IN_DIM, b_pad]
    b1_col = b1.reshape(HIDDEN, 1).astype(jnp.float32)
    w2T = w2.reshape(OUT_DIM, HIDDEN).T.astype(jnp.float32)           # [HIDDEN, OUT_DIM]
    b2_flat = b2.reshape(OUT_DIM).astype(jnp.float32)

    outT = pl.pallas_call(
        simple_nn_kernel,
        out_shape=jax.ShapeDtypeStruct((OUT_DIM, b_pad), jnp.float32),
        grid=grid,
        in_specs=[
            pl.BlockSpec((IN_DIM, tb), lambda i: (0, i)),          # x tile, lane-dense
            pl.BlockSpec((HIDDEN, IN_DIM), lambda i: (0, 0)),      # w1 (pinned)
            pl.BlockSpec((HIDDEN, 1), lambda i: (0, 0)),           # b1 (pinned)
            pl.BlockSpec((HIDDEN, OUT_DIM), lambda i: (0, 0)),     # w2^T (pinned)
            pl.BlockSpec(memory_space=pltpu.MemorySpace.SMEM),     # b2 scalar
        ],
        out_specs=pl.BlockSpec((OUT_DIM, tb), lambda i: (0, i)),   # lane-dense stores
        compiler_params=pltpu.CompilerParams(
            dimension_semantics=("parallel",),
        ),
    )(xT, w1.astype(jnp.float32), b1_col, w2T, b2_flat)

    return outT[:, :B].T                                           # [B, OUT_DIM]


def init_params(key):
    # nn.Linear-style uniform(-1/sqrt(fan_in), 1/sqrt(fan_in)), PyTorch layouts.
    k1, k2, k3, k4 = jax.random.split(key, 4)
    bound1 = 1.0 / jnp.sqrt(IN_DIM)
    bound2 = 1.0 / jnp.sqrt(HIDDEN)
    w1 = jax.random.uniform(k1, (HIDDEN, IN_DIM), jnp.float32, -bound1, bound1)
    b1 = jax.random.uniform(k2, (HIDDEN,), jnp.float32, -bound1, bound1)
    w2 = jax.random.uniform(k3, (OUT_DIM, HIDDEN), jnp.float32, -bound2, bound2)
    b2 = jax.random.uniform(k4, (OUT_DIM,), jnp.float32, -bound2, bound2)
    return w1, b1, w2, b2


if __name__ == "__main__":
    key = jax.random.PRNGKey(0)
    k_x, k_p = jax.random.split(key)

    B = 8
    x = jax.random.normal(k_x, (B, IN_DIM), jnp.float32)
    w1, b1, w2, b2 = init_params(k_p)

    out = simple_nn_forward(x, w1, b1, w2, b2)
    out = jax.block_until_ready(out)

    # Pure-JAX reference (true-f32 matmuls) of the PyTorch forward semantics.
    hp = jax.lax.Precision.HIGHEST
    ref_h = jnp.maximum(jnp.dot(x, w1.T, precision=hp) + b1, 0.0)
    ref = jnp.dot(ref_h, w2.T, precision=hp) + b2

    assert out.shape == (B, OUT_DIM)
    assert jnp.allclose(out, ref, atol=1e-5, rtol=1e-5)

    print("KERNEL_OK")
</pallas_src>

<mosaic_0001>
module attributes {stable_mosaic.version = 11 : i64} {
  func.func @simple_nn_kernel(%arg0: i32, %arg1: memref<2x128xf32, #tpu.memory_space<vmem>>, %arg2: memref<64x2xf32, #tpu.memory_space<vmem>>, %arg3: memref<64x1xf32, #tpu.memory_space<vmem>>, %arg4: memref<64x1xf32, #tpu.memory_space<vmem>>, %arg5: memref<1xf32, #tpu.memory_space<smem>>, %arg6: memref<1x128xf32, #tpu.memory_space<vmem>>) attributes {dimension_semantics = [#tpu.dimension_semantics<parallel>], iteration_bounds = array<i64: 1>, scalar_prefetch = 0 : i64, scratch_operands = 0 : i64, tpu.core_type = #tpu.core_type<tc>, window_params = [{transform_indices = @transform_0, window_bounds = array<i64: 2, 128>}, {pipeline_mode = #tpu.pipeline_mode<synchronous>, transform_indices = @transform_1, window_bounds = array<i64: 64, 2>}, {pipeline_mode = #tpu.pipeline_mode<synchronous>, transform_indices = @transform_2, window_bounds = array<i64: 64, 1>}, {pipeline_mode = #tpu.pipeline_mode<synchronous>, transform_indices = @transform_3, window_bounds = array<i64: 64, 1>}, {transform_indices = @transform_4, window_bounds = array<i64: 1>}, {transform_indices = @transform_5, window_bounds = array<i64: 1, 128>}]} {
    %c0 = arith.constant 0 : index
    %c0_0 = arith.constant 0 : index
    %0 = vector.load %arg1[%c0, %c0_0] : memref<2x128xf32, #tpu.memory_space<vmem>>, vector<2x128xf32>
    %c0_1 = arith.constant 0 : index
    %c0_2 = arith.constant 0 : index
    %1 = vector.load %arg2[%c0_1, %c0_2] : memref<64x2xf32, #tpu.memory_space<vmem>>, vector<64x2xf32>
    %c0_3 = arith.constant 0 : index
    %c0_4 = arith.constant 0 : index
    %2 = vector.load %arg3[%c0_3, %c0_4] : memref<64x1xf32, #tpu.memory_space<vmem>>, vector<64x1xf32>
    %3 = vector.extract_strided_slice %1 {offsets = [0, 0], sizes = [64, 1], strides = [1, 1]} : vector<64x2xf32> to vector<64x1xf32>
    %4 = vector.extract_strided_slice %0 {offsets = [0, 0], sizes = [1, 128], strides = [1, 1]} : vector<2x128xf32> to vector<1x128xf32>
    %5 = vector.broadcast %3 : vector<64x1xf32> to vector<64x128xf32>
    %6 = vector.broadcast %4 : vector<1x128xf32> to vector<64x128xf32>
    %7 = arith.mulf %5, %6 : vector<64x128xf32>
    %8 = vector.broadcast %2 : vector<64x1xf32> to vector<64x128xf32>
    %9 = arith.addf %8, %7 : vector<64x128xf32>
    %10 = vector.extract_strided_slice %1 {offsets = [0, 1], sizes = [64, 1], strides = [1, 1]} : vector<64x2xf32> to vector<64x1xf32>
    %11 = vector.extract_strided_slice %0 {offsets = [1, 0], sizes = [1, 128], strides = [1, 1]} : vector<2x128xf32> to vector<1x128xf32>
    %12 = vector.broadcast %10 : vector<64x1xf32> to vector<64x128xf32>
    %13 = vector.broadcast %11 : vector<1x128xf32> to vector<64x128xf32>
    %14 = arith.mulf %12, %13 : vector<64x128xf32>
    %15 = arith.addf %9, %14 : vector<64x128xf32>
    %cst = arith.constant 0.000000e+00 : f32
    %16 = vector.broadcast %cst : f32 to vector<64x128xf32>
    %17 = arith.maximumf %15, %16 : vector<64x128xf32>
    %c0_5 = arith.constant 0 : index
    %c0_6 = arith.constant 0 : index
    %18 = vector.load %arg4[%c0_5, %c0_6] : memref<64x1xf32, #tpu.memory_space<vmem>>, vector<64x1xf32>
    %19 = vector.broadcast %18 : vector<64x1xf32> to vector<64x128xf32>
    %20 = arith.mulf %19, %17 : vector<64x128xf32>
    %cst_7 = arith.constant dense<0.000000e+00> : vector<128xf32>
    %21 = vector.multi_reduction <add>, %20, %cst_7 [0] : vector<64x128xf32> to vector<128xf32>
    %22 = vector.shape_cast %21 : vector<128xf32> to vector<1x128xf32>
    %c0_8 = arith.constant 0 : index
    %23 = memref.load %arg5[%c0_8] : memref<1xf32, #tpu.memory_space<smem>>
    %24 = vector.broadcast %23 : f32 to vector<1x128xf32>
    %25 = arith.addf %22, %24 : vector<1x128xf32>
    %c0_9 = arith.constant 0 : index
    %c0_10 = arith.constant 0 : index
    %26 = vector.load %arg6[%c0_9, %c0_10] : memref<1x128xf32, #tpu.memory_space<vmem>>, vector<1x128xf32>
    tpu.vector_store %arg6[%c0_9, %c0_10], %25 {strides = array<i32>} : memref<1x128xf32, #tpu.memory_space<vmem>>, vector<1x128xf32>,
    return
  }
  func.func @transform_0(%arg0: i32) -> (i32, i32) {
    %c0_i32 = arith.constant 0 : i32
    %c0_i32_0 = arith.constant 0 : i32
    return %c0_i32, %arg0 : i32, i32
  }
  func.func @transform_1(%arg0: i32) -> (i32, i32) {
    %c0_i32 = arith.constant 0 : i32
    %c0_i32_0 = arith.constant 0 : i32
    %c0_i32_1 = arith.constant 0 : i32
    return %c0_i32, %c0_i32_0 : i32, i32
  }
  func.func @transform_2(%arg0: i32) -> (i32, i32) {
    %c0_i32 = arith.constant 0 : i32
    %c0_i32_0 = arith.constant 0 : i32
    %c0_i32_1 = arith.constant 0 : i32
    return %c0_i32, %c0_i32_0 : i32, i32
  }
  func.func @transform_3(%arg0: i32) -> (i32, i32) {
    %c0_i32 = arith.constant 0 : i32
    %c0_i32_0 = arith.constant 0 : i32
    %c0_i32_1 = arith.constant 0 : i32
    return %c0_i32, %c0_i32_0 : i32, i32
  }
  func.func @transform_4(%arg0: i32) -> i32 {
    %c0_i32 = arith.constant 0 : i32
    %c0_i32_0 = arith.constant 0 : i32
    return %c0_i32 : i32
  }
  func.func @transform_5(%arg0: i32) -> (i32, i32) {
    %c0_i32 = arith.constant 0 : i32
    %c0_i32_0 = arith.constant 0 : i32
    return %c0_i32, %arg0 : i32, i32
  }
}

</mosaic_0001>

<llo_original>
// kernel: simple_nn_forward.1
$region0: #{simple_nn_forward.1}
  #allocation0 [shape = 'u32[]', space=smem, size = 0x4, offset = 0x4, fixed_abs, tag = 'smem constant byte address 0x4 - core index']
  #allocation1 [shape = 'u32[144,128]{1,0:T(1,128)}', space=vmem, size = 0x12000, scoped, tag = 'internal scratch']
  #allocation2 [shape = 'f32[1]{0:T(128)S(6)}', space=smem, size = 0x200, scoped, tag = 'scoped memory for simple_nn_forward.1']
  %s0 = inlined_call_operand.vmem [shape: f32[2,128], index: 0, kind: input, shape index: {}]
  %s1 = inlined_call_operand.vmem [shape: f32[64,2], index: 1, kind: input, shape index: {}]
  %s2 = inlined_call_operand.vmem [shape: f32[64,1], index: 2, kind: input, shape index: {}]
  %s3 = inlined_call_operand.vmem [shape: f32[64,1], index: 3, kind: input, shape index: {}]
  %s4 = inlined_call_operand.<no memory space> [shape: f32[1], index: 4, kind: input, shape index: {}]
  %s5 = inlined_call_operand.vmem [shape: f32[1,128], index: 5, kind: output, shape index: {}]
  %s6 = sld [smem:[#allocation0]]
  $region30: #{simple_nn_forward.1} parent=0
    _
  %s8 = ssub.s32 1, %s6
  %s9 = scalar_select 0, %s8, %s6
  %10 = sst [smem:[#allocation2]] %s4
  // Predicated region
  $region2: #{simple_nn_forward.1} parent=0 // pred_check
    _
  $region3: #{simple_nn_forward.1} parent=0 // pred_check_branch
    %12 = sbr.rel (0) target = $region5
  $region4: #{simple_nn_forward.1} parent=0 // pred_region
    _
  $region5: #{simple_nn_forward.1} parent=0 // pred_fallthru
    _
  // Predicated region
  $region6: #{simple_nn_forward.1} parent=0 // pred_check
    _
  $region7: #{simple_nn_forward.1} parent=0 // pred_check_branch
    %14 = sbr.rel (0) target = $region9
  $region8: #{simple_nn_forward.1} parent=0 // pred_region
    _
  $region9: #{simple_nn_forward.1} parent=0 // pred_fallthru
    _
  // Predicated region
  $region10: #{simple_nn_forward.1} parent=0 // pred_check
    _
  $region11: #{simple_nn_forward.1} parent=0 // pred_check_branch
    %16 = sbr.rel (0) target = $region13
  $region12: #{simple_nn_forward.1} parent=0 // pred_region
    _
  $region13: #{simple_nn_forward.1} parent=0 // pred_fallthru
    _
  // Predicated region
  $region14: #{simple_nn_forward.1} parent=0 // pred_check
    _
  $region15: #{simple_nn_forward.1} parent=0 // pred_check_branch
    %18 = sbr.rel (0) target = $region17
  $region16: #{simple_nn_forward.1} parent=0 // pred_region
    _
  $region17: #{simple_nn_forward.1} parent=0 // pred_fallthru
    _
  // Predicated region
  $region18: #{simple_nn_forward.1} parent=0 // pred_check
    _
  $region19: #{simple_nn_forward.1} parent=0 // pred_check_branch
    %20 = sbr.rel (0) target = $region21
  $region20: #{simple_nn_forward.1} parent=0 // pred_region
    _
  $region21: #{simple_nn_forward.1} parent=0 // pred_fallthru
    _
  %v21 = vld [vmem:[%s0] sm:$0x3]
  %v22 = vld [vmem:[%s1] sm:$0xff]
  %v23 = vld [vmem:[%s1 + $0x8] sm:$0xff]
  %v24 = vld [vmem:[%s1 + $0x10] sm:$0xff]
  %v25 = vld [vmem:[%s1 + $0x18] sm:$0xff]
  %v26 = vld [vmem:[%s1 + $0x20] sm:$0xff]
  %v27 = vld [vmem:[%s1 + $0x28] sm:$0xff]
  %v28 = vld [vmem:[%s1 + $0x30] sm:$0xff]
  %v29 = vld [vmem:[%s1 + $0x38] sm:$0xff]
  %v30 = vld [vmem:[%s2] sm:$0xff]
  %v31 = vld [vmem:[%s2 + $0x8] sm:$0xff]
  %v32 = vld [vmem:[%s2 + $0x10] sm:$0xff]
  %v33 = vld [vmem:[%s2 + $0x18] sm:$0xff]
  %v34 = vld [vmem:[%s2 + $0x20] sm:$0xff]
  %v35 = vld [vmem:[%s2 + $0x28] sm:$0xff]
  %v36 = vld [vmem:[%s2 + $0x30] sm:$0xff]
  %v37 = vld [vmem:[%s2 + $0x38] sm:$0xff]
  %39 = vset.pattern.permute.xlu0 0
  %40 = vperm.xlu0 %39, %v22
  %v41 = vpop.permute.xlu0 %40
  %44 = vset.pattern.permute.xlu0 0
  %45 = vperm.xlu0 %44, %v23
  %v46 = vpop.permute.xlu0 %45
  %49 = vset.pattern.permute.xlu0 0
  %50 = vperm.xlu0 %49, %v24
  %v51 = vpop.permute.xlu0 %50
  %54 = vset.pattern.permute.xlu0 0
  %55 = vperm.xlu0 %54, %v25
  %v56 = vpop.permute.xlu0 %55
  %59 = vset.pattern.permute.xlu0 0
  %60 = vperm.xlu0 %59, %v26
  %v61 = vpop.permute.xlu0 %60
  %64 = vset.pattern.permute.xlu0 0
  %65 = vperm.xlu0 %64, %v27
  %v66 = vpop.permute.xlu0 %65
  %69 = vset.pattern.permute.xlu0 0
  %70 = vperm.xlu0 %69, %v28
  %v71 = vpop.permute.xlu0 %70
  %74 = vset.pattern.permute.xlu0 0
  %75 = vperm.xlu0 %74, %v29
  %v76 = vpop.permute.xlu0 %75
  %v78 = vlaneseq
  %v79 = vshrl.u32 %v78, 7
  %v80 = vsub.s32 0, %v79
  %v81 = vrot.slane %v21, %v80
  %v82 = vmul.f32 %v41, %v81
  %v83 = vmul.f32 %v46, %v81
  %v84 = vmul.f32 %v51, %v81
  %v85 = vmul.f32 %v56, %v81
  %v86 = vmul.f32 %v61, %v81
  %v87 = vmul.f32 %v66, %v81
  %v88 = vmul.f32 %v71, %v81
  %v89 = vmul.f32 %v76, %v81
  %91 = vset.pattern.permute.xlu0 0
  %92 = vperm.xlu0 %91, %v30
  %v93 = vpop.permute.xlu0 %92
  %96 = vset.pattern.permute.xlu0 0
  %97 = vperm.xlu0 %96, %v31
  %v98 = vpop.permute.xlu0 %97
  %101 = vset.pattern.permute.xlu0 0
  %102 = vperm.xlu0 %101, %v32
  %v103 = vpop.permute.xlu0 %102
  %106 = vset.pattern.permute.xlu0 0
  %107 = vperm.xlu0 %106, %v33
  %v108 = vpop.permute.xlu0 %107
  %111 = vset.pattern.permute.xlu0 0
  %112 = vperm.xlu0 %111, %v34
  %v113 = vpop.permute.xlu0 %112
  %116 = vset.pattern.permute.xlu0 0
  %117 = vperm.xlu0 %116, %v35
  %v118 = vpop.permute.xlu0 %117
  %121 = vset.pattern.permute.xlu0 0
  %122 = vperm.xlu0 %121, %v36
  %v123 = vpop.permute.xlu0 %122
  %126 = vset.pattern.permute.xlu0 0
  %127 = vperm.xlu0 %126, %v37
  %v128 = vpop.permute.xlu0 %127
  %v130 = vadd.f32 %v93, %v82
  %v131 = vadd.f32 %v98, %v83
  %v132 = vadd.f32 %v103, %v84
  %v133 = vadd.f32 %v108, %v85
  %v134 = vadd.f32 %v113, %v86
  %v135 = vadd.f32 %v118, %v87
  %v136 = vadd.f32 %v123, %v88
  %v137 = vadd.f32 %v128, %v89
  %138 = vset.pattern.permute.xlu0 1
  %139 = vperm.xlu0 %138, %v22
  %v140 = vpop.permute.xlu0 %139
  %142 = vset.pattern.permute.xlu0 1
  %143 = vperm.xlu0 %142, %v23
  %v144 = vpop.permute.xlu0 %143
  %146 = vset.pattern.permute.xlu0 1
  %147 = vperm.xlu0 %146, %v24
  %v148 = vpop.permute.xlu0 %147
  %150 = vset.pattern.permute.xlu0 1
  %151 = vperm.xlu0 %150, %v25
  %v152 = vpop.permute.xlu0 %151
  %154 = vset.pattern.permute.xlu0 1
  %155 = vperm.xlu0 %154, %v26
  %v156 = vpop.permute.xlu0 %155
  %158 = vset.pattern.permute.xlu0 1
  %159 = vperm.xlu0 %158, %v27
  %v160 = vpop.permute.xlu0 %159
  %162 = vset.pattern.permute.xlu0 1
  %163 = vperm.xlu0 %162, %v28
  %v164 = vpop.permute.xlu0 %163
  %166 = vset.pattern.permute.xlu0 1
  %167 = vperm.xlu0 %166, %v29
  %v168 = vpop.permute.xlu0 %167
  %v170 = vlaneseq
  %v171 = vshrl.u32 %v170, 7
  %v172 = vsub.s32 1, %v171
  %v173 = vrot.slane %v21, %v172
  %v174 = vmul.f32 %v140, %v173
  %v175 = vmul.f32 %v144, %v173
  %v176 = vmul.f32 %v148, %v173
  %v177 = vmul.f32 %v152, %v173
  %v178 = vmul.f32 %v156, %v173
  %v179 = vmul.f32 %v160, %v173
  %v180 = vmul.f32 %v164, %v173
  %v181 = vmul.f32 %v168, %v173
  %v182 = vadd.f32 %v130, %v174
  %v183 = vadd.f32 %v131, %v175
  %v184 = vadd.f32 %v132, %v176
  %v185 = vadd.f32 %v133, %v177
  %v186 = vadd.f32 %v134, %v178
  %v187 = vadd.f32 %v135, %v179
  %v188 = vadd.f32 %v136, %v180
  %v189 = vadd.f32 %v137, %v181
  %v190 = vmax.f32 %v182, 0.0
  %v191 = vmax.f32 %v183, 0.0
  %v192 = vmax.f32 %v184, 0.0
  %v193 = vmax.f32 %v185, 0.0
  %v194 = vmax.f32 %v186, 0.0
  %v195 = vmax.f32 %v187, 0.0
  %v196 = vmax.f32 %v188, 0.0
  %v197 = vmax.f32 %v189, 0.0
  %v198 = vld [vmem:[%s3] sm:$0xff]
  %v199 = vld [vmem:[%s3 + $0x8] sm:$0xff]
  %v200 = vld [vmem:[%s3 + $0x10] sm:$0xff]
  %v201 = vld [vmem:[%s3 + $0x18] sm:$0xff]
  %v202 = vld [vmem:[%s3 + $0x20] sm:$0xff]
  %v203 = vld [vmem:[%s3 + $0x28] sm:$0xff]
  %v204 = vld [vmem:[%s3 + $0x30] sm:$0xff]
  %v205 = vld [vmem:[%s3 + $0x38] sm:$0xff]
  %207 = vset.pattern.permute.xlu0 0
  %208 = vperm.xlu0 %207, %v198
  %v209 = vpop.permute.xlu0 %208
  %212 = vset.pattern.permute.xlu0 0
  %213 = vperm.xlu0 %212, %v199
  %v214 = vpop.permute.xlu0 %213
  %217 = vset.pattern.permute.xlu0 0
  %218 = vperm.xlu0 %217, %v200
  %v219 = vpop.permute.xlu0 %218
  %222 = vset.pattern.permute.xlu0 0
  %223 = vperm.xlu0 %222, %v201
  %v224 = vpop.permute.xlu0 %223
  %227 = vset.pattern.permute.xlu0 0
  %228 = vperm.xlu0 %227, %v202
  %v229 = vpop.permute.xlu0 %228
  %232 = vset.pattern.permute.xlu0 0
  %233 = vperm.xlu0 %232, %v203
  %v234 = vpop.permute.xlu0 %233
  %237 = vset.pattern.permute.xlu0 0
  %238 = vperm.xlu0 %237, %v204
  %v239 = vpop.permute.xlu0 %238
  %242 = vset.pattern.permute.xlu0 0
  %243 = vperm.xlu0 %242, %v205
  %v244 = vpop.permute.xlu0 %243
  %v246 = vmul.f32 %v209, %v190
  %v247 = vmul.f32 %v214, %v191
  %v248 = vmul.f32 %v219, %v192
  %v249 = vmul.f32 %v224, %v193
  %v250 = vmul.f32 %v229, %v194
  %v251 = vmul.f32 %v234, %v195
  %v252 = vmul.f32 %v239, %v196
  %v253 = vmul.f32 %v244, %v197
  %v254 = vadd.f32 %v246, %v247
  %v255 = vadd.f32 %v254, %v248
  %v256 = vadd.f32 %v255, %v249
  %v257 = vadd.f32 %v256, %v250
  %v258 = vadd.f32 %v257, %v251
  %v259 = vadd.f32 %v258, %v252
  %v260 = vadd.f32 %v259, %v253
  %v261 = vrot.slane %v260, 4
  %v262 = vadd.f32 %v260, %v261
  %v263 = vrot.slane %v262, 2
  %v264 = vadd.f32 %v262, %v263
  %v265 = vrot.slane %v264, 1
  %v266 = vadd.f32 %v264, %v265
  %s267 = sld [smem:[#allocation2]]
  %v268 = vstv %s267
  %v269 = vadd.f32 %v266, %v268
  %270 = vst [vmem:[%s5] sm:$0x1] %v269
  // Predicated region
  $region22: #{simple_nn_forward.1} parent=0 // pred_check
    _
  $region23: #{simple_nn_forward.1} parent=0 // pred_check_branch
    %272 = sbr.rel (0) target = $region25
  $region24: #{simple_nn_forward.1} parent=0 // pred_region
    _
  $region25: #{simple_nn_forward.1} parent=0 // pred_fallthru
    _
  // Predicated region
  $region26: #{simple_nn_forward.1} parent=0 // pred_check
    _
  $region27: #{simple_nn_forward.1} parent=0 // pred_check_branch
    %274 = sbr.rel (0) target = $region29
  $region28: #{simple_nn_forward.1} parent=0 // pred_region
    _
  $region29: #{simple_nn_forward.1} parent=0 // pred_fallthru
    _

</llo_original>
